<compile_context>
chip_gen: v5e
topology: v5e:2x2
jax: 0.10.0
libtpu: 0.0.40
codegen_flags: <defaults>
</compile_context>

<pallas_src>
import functools

import jax
import jax.numpy as jnp
from jax.experimental import pallas as pl
from jax.experimental.pallas import tpu as pltpu


# --------------------------------------------------------------------------
# Conv2d 3x3, stride 1, padding 1, fused ReLU and (optional) MaxPool2d(2,2).
# NHWC activations, weights pre-flattened to (9*Cin, Cout) in HWIO order.
# --------------------------------------------------------------------------
def _conv3x3_relu_kernel(x_ref, w_ref, b_ref, o_ref, pool_scr, *, th, w_out, pool):
    # x_ref: (1, H+2, W+2, Cin) zero-padded image, resident across row blocks
    # w_ref: (9*Cin, Cout)    b_ref: (1, Cout)
    # o_ref: (1, th, W, Cout) if not pool else (1, th//2, W//2, Cout)
    cin = x_ref.shape[3]
    cout = o_ref.shape[3]
    r0 = pl.multiple_of(pl.program_id(1) * th, th)

    # im2col in-register: 9 shifted (th, W, Cin) slabs -> (th*W, 9*Cin)
    taps = []
    for kh in range(3):
        for kw in range(3):
            slab = x_ref[0, pl.ds(r0 + kh, th), pl.ds(kw, w_out), :]
            taps.append(slab.reshape(th * w_out, cin))
    patches = jnp.concatenate(taps, axis=-1)

    acc = jnp.dot(patches, w_ref[...], preferred_element_type=jnp.float32)
    acc = jnp.maximum(acc + b_ref[...], 0.0)              # (th*W, Cout)

    if not pool:
        o_ref[0] = acc.reshape(th, w_out, cout).astype(o_ref.dtype)
    else:
        # Fused MaxPool2d(2,2): rows via an outer-dim reshape + max, columns
        # via sublane-strided reads from a VMEM scratch.
        y = jnp.max(acc.reshape(th // 2, 2, w_out, cout), axis=1)
        pool_scr[...] = y
        o_ref[0] = jnp.maximum(
            pool_scr[:, pl.ds(0, w_out // 2, stride=2), :],
            pool_scr[:, pl.ds(1, w_out // 2, stride=2), :],
        ).astype(o_ref.dtype)


def conv3x3_relu(x_nhwc, w_hwio, b, *, pool=False):
    n, h, w, cin = x_nhwc.shape
    cout = w_hwio.shape[-1]
    th = min(8, h)                       # M = th*w rows per MXU GEMM
    assert h % th == 0, "row-block remainder not implemented"
    if pool:
        assert th % 2 == 0 and w % 2 == 0

    # TODO(synk): handle the 1-pixel halo in-kernel (masked edge taps) to avoid
    # this padded HBM copy; kept here so both grid axes stay "parallel".
    xp = jnp.pad(x_nhwc, ((0, 0), (1, 1), (1, 1), (0, 0)))
    w_flat = w_hwio.reshape(9 * cin, cout)

    out_hw = (h // 2, w // 2) if pool else (h, w)
    out_block = (1, th // 2, w // 2, cout) if pool else (1, th, w, cout)

    return pl.pallas_call(
        functools.partial(_conv3x3_relu_kernel, th=th, w_out=w, pool=pool),
        out_shape=jax.ShapeDtypeStruct((n, out_hw[0], out_hw[1], cout),
                                       x_nhwc.dtype),
        grid_spec=pltpu.PrefetchScalarGridSpec(
            num_scalar_prefetch=0,
            grid=(n, h // th),
            in_specs=[
                pl.BlockSpec((1, h + 2, w + 2, cin), lambda i, j: (i, 0, 0, 0)),
                pl.BlockSpec((9 * cin, cout), lambda i, j: (0, 0)),
                pl.BlockSpec((1, cout), lambda i, j: (0, 0)),
            ],
            out_specs=pl.BlockSpec(out_block, lambda i, j: (i, j, 0, 0)),
            scratch_shapes=[pltpu.VMEM((max(th // 2, 1), w, cout), jnp.float32)],
        ),
        compiler_params=pltpu.CompilerParams(
            dimension_semantics=("parallel", "parallel")),
    )(xp, w_flat, b.reshape(1, cout))


# --------------------------------------------------------------------------
# AdaptiveAvgPool2d((7, 7))
# --------------------------------------------------------------------------
def _uniform_pool_window(in_size, out_size):
    # PyTorch adaptive pooling window formula.
    starts = [(i * in_size) // out_size for i in range(out_size)]
    ends = [-((-((i + 1) * in_size)) // out_size) for i in range(out_size)]
    sizes = [e - s for s, e in zip(starts, ends)]
    k = sizes[0]
    if any(sz != k for sz in sizes) or starts != list(range(out_size)):
        # TODO(synk): general AdaptiveAvgPool2d with non-uniform / strided windows.
        raise NotImplementedError("only uniform stride-1 adaptive windows supported")
    return k


def _avgpool_kernel(x_ref, o_ref, *, kh, kw):
    oh, ow, c = o_ref.shape[1], o_ref.shape[2], o_ref.shape[3]
    acc = jnp.zeros((oh, ow, c), jnp.float32)
    for di in range(kh):
        for dj in range(kw):
            acc = acc + x_ref[0, di:di + oh, dj:dj + ow, :].astype(jnp.float32)
    o_ref[0] = (acc * (1.0 / (kh * kw))).astype(o_ref.dtype)


def adaptive_avgpool(x_nhwc, out_hw=(7, 7)):
    n, h, w, c = x_nhwc.shape
    oh, ow = out_hw
    kh = _uniform_pool_window(h, oh)
    kw = _uniform_pool_window(w, ow)
    return pl.pallas_call(
        functools.partial(_avgpool_kernel, kh=kh, kw=kw),
        out_shape=jax.ShapeDtypeStruct((n, oh, ow, c), x_nhwc.dtype),
        grid_spec=pltpu.PrefetchScalarGridSpec(
            num_scalar_prefetch=0,
            grid=(n,),
            in_specs=[pl.BlockSpec((1, h, w, c), lambda i: (i, 0, 0, 0))],
            out_specs=pl.BlockSpec((1, oh, ow, c), lambda i: (i, 0, 0, 0)),
        ),
        compiler_params=pltpu.CompilerParams(dimension_semantics=("parallel",)),
    )(x_nhwc)


# --------------------------------------------------------------------------
# Linear (+ optional fused ReLU), K-reduction tiled matmul.
# Weights streamed in bf16, f32 accumulation, large lane-dense tiles.
# --------------------------------------------------------------------------
def _linear_kernel(x_ref, w_ref, b_ref, o_ref, acc_ref, *, relu):
    @pl.when(pl.program_id(1) == 0)
    def _():
        acc_ref[...] = jnp.zeros_like(acc_ref)

    acc_ref[...] += jnp.dot(x_ref[...].astype(w_ref.dtype), w_ref[...],
                            preferred_element_type=jnp.float32)

    @pl.when(pl.program_id(1) == pl.num_programs(1) - 1)
    def _():
        r = acc_ref[...] + b_ref[...]
        if relu:
            r = jnp.maximum(r, 0.0)
        o_ref[...] = r.astype(o_ref.dtype)


def _largest_tile(dim, cap):
    t = min(cap, dim)
    t -= t % 128
    while dim % t:
        t -= 128
    return t


def linear(x, w, b, *, relu=False, tn_cap=1024, tk_cap=2048):
    m, k = x.shape
    _, nout = w.shape
    assert k % 128 == 0 and nout % 128 == 0, "pad K/N to multiples of 128"
    tk = _largest_tile(k, tk_cap)        # fc1: 1792 (3.5 MB bf16 weight tile)
    tn = _largest_tile(nout, tn_cap)
    return pl.pallas_call(
        functools.partial(_linear_kernel, relu=relu),
        out_shape=jax.ShapeDtypeStruct((m, nout), jnp.float32),
        grid_spec=pltpu.PrefetchScalarGridSpec(
            num_scalar_prefetch=0,
            grid=(nout // tn, k // tk),
            in_specs=[
                pl.BlockSpec((m, tk), lambda j, kk: (0, kk)),
                pl.BlockSpec((tk, tn), lambda j, kk: (kk, j)),
                pl.BlockSpec((1, tn), lambda j, kk: (0, j)),
            ],
            out_specs=pl.BlockSpec((m, tn), lambda j, kk: (0, j)),
            scratch_shapes=[pltpu.VMEM((m, tn), jnp.float32)],
        ),
        compiler_params=pltpu.CompilerParams(
            dimension_semantics=("parallel", "arbitrary"),
            vmem_limit_bytes=32 * 1024 * 1024),
    )(x, w, b.reshape(1, nout))


# --------------------------------------------------------------------------
# VGG module (forward with local=False, prune=False; eval-mode dropout)
# --------------------------------------------------------------------------
class VGGPallas:
    def __init__(self, num_classes=10, key=jax.random.PRNGKey(0)):
        self.num_classes = num_classes
        k = jax.random.split(key, 8)

        def conv_w(key, cin, cout):   # kaiming_normal_, fan_out, relu
            std = (2.0 / (9 * cout)) ** 0.5
            return std * jax.random.normal(key, (3, 3, cin, cout), jnp.float32)

        # synthetic `features`: Conv(3->64)+ReLU -> MaxPool2x2 -> Conv(64->512)+ReLU
        self.cw1 = conv_w(k[0], 3, 64)
        self.cb1 = jnp.zeros((64,), jnp.float32)
        self.cw2 = conv_w(k[1], 64, 512)
        self.cb2 = jnp.zeros((512,), jnp.float32)

        # classifier: Linear(512*7*7,4096) ReLU Drop Linear(4096,4096) ReLU Drop
        #             Linear(4096,num_classes); normal(0,0.01) init, zero bias.
        # Weights stored in bf16 (the classifier is HBM-bandwidth bound at small
        # batch); accumulation remains f32 inside the kernel.
        def lin_w(key, fin, fout):
            w = 0.01 * jax.random.normal(key, (fin, fout), jnp.float32)
            return w.astype(jnp.bfloat16)

        self.fw1 = lin_w(k[2], 512 * 7 * 7, 4096)
        self.fb1 = jnp.zeros((4096,), jnp.float32)
        self.fw2 = lin_w(k[3], 4096, 4096)
        self.fb2 = jnp.zeros((4096,), jnp.float32)

        # pad final output dim to a lane-dense multiple of 128; slice in forward()
        nc_pad = ((num_classes + 127) // 128) * 128
        w3 = 0.01 * jax.random.normal(k[4], (4096, num_classes), jnp.float32)
        self.fw3 = jnp.pad(w3, ((0, 0), (0, nc_pad - num_classes))).astype(jnp.bfloat16)
        self.fb3 = jnp.zeros((nc_pad,), jnp.float32)

    def forward(self, x_nchw):
        x = jnp.transpose(x_nchw, (0, 2, 3, 1))              # NCHW -> NHWC
        # self.features(x): Conv+ReLU with fused MaxPool2x2, then Conv+ReLU
        x = conv3x3_relu(x, self.cw1, self.cb1, pool=True)
        x = conv3x3_relu(x, self.cw2, self.cb2, pool=False)
        # self.avgpool(x)  (AdaptiveAvgPool2d((7,7)))
        x = adaptive_avgpool(x, (7, 7))
        # torch.flatten(x, 1) in NCHW (channel-major) order
        x = jnp.transpose(x, (0, 3, 1, 2)).reshape(x.shape[0], -1)
        # self.classifier(x)  (Dropout == identity in eval mode)
        x = linear(x, self.fw1, self.fb1, relu=True)
        x = linear(x, self.fw2, self.fb2, relu=True)
        x = linear(x, self.fw3, self.fb3, relu=False)
        return x[:, :self.num_classes]


if __name__ == "__main__":
    root = jax.random.PRNGKey(0)
    k_param, k_input = jax.random.split(root)
    model = VGGPallas(num_classes=10, key=k_param)
    x = jax.random.normal(k_input, (2, 3, 16, 16), jnp.float32)   # NCHW input
    out = model.forward(x)
    jax.block_until_ready(out)
    assert out.shape == (2, 10) and out.dtype == jnp.float32
    print("KERNEL_OK")
</pallas_src>

<mosaic_0001>
module attributes {stable_mosaic.version = 11 : i64} {
  func.func @_conv3x3_relu_kernel(%arg0: i32, %arg1: i32, %arg2: memref<1x18x18x3xf32, #tpu.memory_space<vmem>>, %arg3: memref<27x64xf32, #tpu.memory_space<vmem>>, %arg4: memref<1x64xf32, #tpu.memory_space<vmem>>, %arg5: memref<1x4x8x64xf32, #tpu.memory_space<vmem>>, %arg6: memref<4x16x64xf32, #tpu.memory_space<vmem>>) attributes {dimension_semantics = [#tpu.dimension_semantics<parallel>, #tpu.dimension_semantics<parallel>], iteration_bounds = array<i64: 2, 2>, scalar_prefetch = 0 : i64, scratch_operands = 1 : i64, tpu.core_type = #tpu.core_type<tc>, window_params = [{transform_indices = @transform_0, window_bounds = array<i64: 1, 18, 18, 3>}, {pipeline_mode = #tpu.pipeline_mode<synchronous>, transform_indices = @transform_1, window_bounds = array<i64: 27, 64>}, {pipeline_mode = #tpu.pipeline_mode<synchronous>, transform_indices = @transform_2, window_bounds = array<i64: 1, 64>}, {transform_indices = @transform_3, window_bounds = array<i64: 1, 4, 8, 64>}]} {
    %c8_i32 = arith.constant 8 : i32
    %0 = arith.muli %arg1, %c8_i32 : i32
    %1 = tpu.assume_multiple %0, 8 : i32
    %c0_i32 = arith.constant 0 : i32
    %2 = arith.addi %1, %c0_i32 : i32
    %c0 = arith.constant 0 : index
    %3 = arith.index_cast %2 : i32 to index
    %c0_0 = arith.constant 0 : index
    %c0_1 = arith.constant 0 : index
    %4 = vector.load %arg2[%c0, %3, %c0_0, %c0_1] : memref<1x18x18x3xf32, #tpu.memory_space<vmem>>, vector<1x8x16x3xf32>
    %5 = vector.shape_cast %4 : vector<1x8x16x3xf32> to vector<8x16x3xf32>
    %6 = vector.shape_cast %5 : vector<8x16x3xf32> to vector<128x3xf32>
    %c0_i32_2 = arith.constant 0 : i32
    %7 = arith.addi %1, %c0_i32_2 : i32
    %c0_3 = arith.constant 0 : index
    %8 = arith.index_cast %7 : i32 to index
    %c1 = arith.constant 1 : index
    %c0_4 = arith.constant 0 : index
    %9 = vector.load %arg2[%c0_3, %8, %c1, %c0_4] : memref<1x18x18x3xf32, #tpu.memory_space<vmem>>, vector<1x8x16x3xf32>
    %10 = vector.shape_cast %9 : vector<1x8x16x3xf32> to vector<8x16x3xf32>
    %11 = vector.shape_cast %10 : vector<8x16x3xf32> to vector<128x3xf32>
    %c0_i32_5 = arith.constant 0 : i32
    %12 = arith.addi %1, %c0_i32_5 : i32
    %c0_6 = arith.constant 0 : index
    %13 = arith.index_cast %12 : i32 to index
    %c2 = arith.constant 2 : index
    %c0_7 = arith.constant 0 : index
    %14 = vector.load %arg2[%c0_6, %13, %c2, %c0_7] : memref<1x18x18x3xf32, #tpu.memory_space<vmem>>, vector<1x8x16x3xf32>
    %15 = vector.shape_cast %14 : vector<1x8x16x3xf32> to vector<8x16x3xf32>
    %16 = vector.shape_cast %15 : vector<8x16x3xf32> to vector<128x3xf32>
    %c1_i32 = arith.constant 1 : i32
    %17 = arith.addi %1, %c1_i32 : i32
    %c0_8 = arith.constant 0 : index
    %18 = arith.index_cast %17 : i32 to index
    %c0_9 = arith.constant 0 : index
    %c0_10 = arith.constant 0 : index
    %19 = vector.load %arg2[%c0_8, %18, %c0_9, %c0_10] : memref<1x18x18x3xf32, #tpu.memory_space<vmem>>, vector<1x8x16x3xf32>
    %20 = vector.shape_cast %19 : vector<1x8x16x3xf32> to vector<8x16x3xf32>
    %21 = vector.shape_cast %20 : vector<8x16x3xf32> to vector<128x3xf32>
    %c1_i32_11 = arith.constant 1 : i32
    %22 = arith.addi %1, %c1_i32_11 : i32
    %c0_12 = arith.constant 0 : index
    %23 = arith.index_cast %22 : i32 to index
    %c1_13 = arith.constant 1 : index
    %c0_14 = arith.constant 0 : index
    %24 = vector.load %arg2[%c0_12, %23, %c1_13, %c0_14] : memref<1x18x18x3xf32, #tpu.memory_space<vmem>>, vector<1x8x16x3xf32>
    %25 = vector.shape_cast %24 : vector<1x8x16x3xf32> to vector<8x16x3xf32>
    %26 = vector.shape_cast %25 : vector<8x16x3xf32> to vector<128x3xf32>
    %c1_i32_15 = arith.constant 1 : i32
    %27 = arith.addi %1, %c1_i32_15 : i32
    %c0_16 = arith.constant 0 : index
    %28 = arith.index_cast %27 : i32 to index
    %c2_17 = arith.constant 2 : index
    %c0_18 = arith.constant 0 : index
    %29 = vector.load %arg2[%c0_16, %28, %c2_17, %c0_18] : memref<1x18x18x3xf32, #tpu.memory_space<vmem>>, vector<1x8x16x3xf32>
    %30 = vector.shape_cast %29 : vector<1x8x16x3xf32> to vector<8x16x3xf32>
    %31 = vector.shape_cast %30 : vector<8x16x3xf32> to vector<128x3xf32>
    %c2_i32 = arith.constant 2 : i32
    %32 = arith.addi %1, %c2_i32 : i32
    %c0_19 = arith.constant 0 : index
    %33 = arith.index_cast %32 : i32 to index
    %c0_20 = arith.constant 0 : index
    %c0_21 = arith.constant 0 : index
    %34 = vector.load %arg2[%c0_19, %33, %c0_20, %c0_21] : memref<1x18x18x3xf32, #tpu.memory_space<vmem>>, vector<1x8x16x3xf32>
    %35 = vector.shape_cast %34 : vector<1x8x16x3xf32> to vector<8x16x3xf32>
    %36 = vector.shape_cast %35 : vector<8x16x3xf32> to vector<128x3xf32>
    %c2_i32_22 = arith.constant 2 : i32
    %37 = arith.addi %1, %c2_i32_22 : i32
    %c0_23 = arith.constant 0 : index
    %38 = arith.index_cast %37 : i32 to index
    %c1_24 = arith.constant 1 : index
    %c0_25 = arith.constant 0 : index
    %39 = vector.load %arg2[%c0_23, %38, %c1_24, %c0_25] : memref<1x18x18x3xf32, #tpu.memory_space<vmem>>, vector<1x8x16x3xf32>
    %40 = vector.shape_cast %39 : vector<1x8x16x3xf32> to vector<8x16x3xf32>
    %41 = vector.shape_cast %40 : vector<8x16x3xf32> to vector<128x3xf32>
    %c2_i32_26 = arith.constant 2 : i32
    %42 = arith.addi %1, %c2_i32_26 : i32
    %c0_27 = arith.constant 0 : index
    %43 = arith.index_cast %42 : i32 to index
    %c2_28 = arith.constant 2 : index
    %c0_29 = arith.constant 0 : index
    %44 = vector.load %arg2[%c0_27, %43, %c2_28, %c0_29] : memref<1x18x18x3xf32, #tpu.memory_space<vmem>>, vector<1x8x16x3xf32>
    %45 = vector.shape_cast %44 : vector<1x8x16x3xf32> to vector<8x16x3xf32>
    %46 = vector.shape_cast %45 : vector<8x16x3xf32> to vector<128x3xf32>
    %47 = tpu.concatenate %6, %11, %16, %21, %26, %31, %36, %41, %46 in 1 : vector<128x3xf32>, vector<128x3xf32>, vector<128x3xf32>, vector<128x3xf32>, vector<128x3xf32>, vector<128x3xf32>, vector<128x3xf32>, vector<128x3xf32>, vector<128x3xf32> -> vector<128x27xf32>
    %c0_30 = arith.constant 0 : index
    %c0_31 = arith.constant 0 : index
    %48 = vector.load %arg3[%c0_30, %c0_31] : memref<27x64xf32, #tpu.memory_space<vmem>>, vector<27x64xf32>
    %cst = arith.constant dense<0.000000e+00> : vector<128x64xf32>
    %49 = tpu.matmul %47, %48, %cst {dimension_numbers = #tpu.dot_dimension_numbers<[1], [0], [0], [1], [0, 0, 1, 1], [], []>} : vector<128x27xf32>, vector<27x64xf32>, vector<128x64xf32> -> vector<128x64xf32>
    %c0_32 = arith.constant 0 : index
    %c0_33 = arith.constant 0 : index
    %50 = vector.load %arg4[%c0_32, %c0_33] : memref<1x64xf32, #tpu.memory_space<vmem>>, vector<1x64xf32>
    %51 = vector.broadcast %50 : vector<1x64xf32> to vector<128x64xf32>
    %52 = arith.addf %49, %51 : vector<128x64xf32>
    %cst_34 = arith.constant 0.000000e+00 : f32
    %53 = vector.broadcast %cst_34 : f32 to vector<128x64xf32>
    %54 = arith.maximumf %52, %53 : vector<128x64xf32>
    %55 = vector.shape_cast %54 : vector<128x64xf32> to vector<4x2x16x64xf32>
    %cst_35 = arith.constant dense<0xFF800000> : vector<4x16x64xf32>
    %56 = vector.multi_reduction <maximumf>, %55, %cst_35 [1] : vector<4x2x16x64xf32> to vector<4x16x64xf32>
    %c0_36 = arith.constant 0 : index
    %c0_37 = arith.constant 0 : index
    %c0_38 = arith.constant 0 : index
    %57 = vector.load %arg6[%c0_36, %c0_37, %c0_38] : memref<4x16x64xf32, #tpu.memory_space<vmem>>, vector<4x16x64xf32>
    tpu.vector_store %arg6[%c0_36, %c0_37, %c0_38], %56 {strides = array<i32>} : memref<4x16x64xf32, #tpu.memory_space<vmem>>, vector<4x16x64xf32>,
    %c0_39 = arith.constant 0 : index
    %c0_40 = arith.constant 0 : index
    %c0_41 = arith.constant 0 : index
    %58 = tpu.strided_load %arg6[%c0_39, %c0_40, %c0_41] {strides = array<i32: 1, 2, 1>} : memref<4x16x64xf32, #tpu.memory_space<vmem>>, vector<4x8x64xf32>
    %c0_42 = arith.constant 0 : index
    %c1_43 = arith.constant 1 : index
    %c0_44 = arith.constant 0 : index
    %59 = tpu.strided_load %arg6[%c0_42, %c1_43, %c0_44] {strides = array<i32: 1, 2, 1>} : memref<4x16x64xf32, #tpu.memory_space<vmem>>, vector<4x8x64xf32>
    %60 = arith.maximumf %58, %59 : vector<4x8x64xf32>
    %c0_45 = arith.constant 0 : index
    %c0_46 = arith.constant 0 : index
    %c0_47 = arith.constant 0 : index
    %c0_48 = arith.constant 0 : index
    %61 = vector.load %arg5[%c0_45, %c0_46, %c0_47, %c0_48] : memref<1x4x8x64xf32, #tpu.memory_space<vmem>>, vector<1x4x8x64xf32>
    %62 = vector.shape_cast %61 : vector<1x4x8x64xf32> to vector<4x8x64xf32>
    %63 = vector.shape_cast %60 : vector<4x8x64xf32> to vector<1x4x8x64xf32>
    tpu.vector_store %arg5[%c0_45, %c0_46, %c0_47, %c0_48], %63 {strides = array<i32>} : memref<1x4x8x64xf32, #tpu.memory_space<vmem>>, vector<1x4x8x64xf32>,
    return
  }
  func.func @transform_0(%arg0: i32, %arg1: i32) -> (i32, i32, i32, i32) {
    %c0_i32 = arith.constant 0 : i32
    %c0_i32_0 = arith.constant 0 : i32
    %c0_i32_1 = arith.constant 0 : i32
    %c0_i32_2 = arith.constant 0 : i32
    return %arg0, %c0_i32, %c0_i32_0, %c0_i32_1 : i32, i32, i32, i32
  }
  func.func @transform_1(%arg0: i32, %arg1: i32) -> (i32, i32) {
    %c0_i32 = arith.constant 0 : i32
    %c0_i32_0 = arith.constant 0 : i32
    %c0_i32_1 = arith.constant 0 : i32
    return %c0_i32, %c0_i32_0 : i32, i32
  }
  func.func @transform_2(%arg0: i32, %arg1: i32) -> (i32, i32) {
    %c0_i32 = arith.constant 0 : i32
    %c0_i32_0 = arith.constant 0 : i32
    %c0_i32_1 = arith.constant 0 : i32
    return %c0_i32, %c0_i32_0 : i32, i32
  }
  func.func @transform_3(%arg0: i32, %arg1: i32) -> (i32, i32, i32, i32) {
    %c0_i32 = arith.constant 0 : i32
    %c0_i32_0 = arith.constant 0 : i32
    %c0_i32_1 = arith.constant 0 : i32
    return %arg0, %arg1, %c0_i32, %c0_i32_0 : i32, i32, i32, i32
  }
}

</mosaic_0001>

<llo_original>
// kernel: tpu_custom_call.1
$region0: #{tpu_custom_call.1}
  #allocation0 [shape = 'u32[]', space=smem, size = 0x4, offset = 0x4, fixed_abs, tag = 'smem constant byte address 0x4 - core index']
  #allocation1 [shape = 'u32[72,128]{1,0:T(1,128)}', space=vmem, size = 0x9000, scoped, tag = 'internal scratch']
  #allocation2 [shape = 'f32[4,16,64]{2,1,0:T(8,128)}', space=vmem, size = 0x8000, scoped, tag = 'scratch operand']
  %s0 = inlined_call_operand.vmem [shape: f32[2,18,18,3], index: 0, kind: input, shape index: {}]
  %s1 = inlined_call_operand.vmem [shape: f32[27,64], index: 1, kind: input, shape index: {}]
  %s2 = inlined_call_operand.vmem [shape: f32[1,64], index: 2, kind: input, shape index: {}]
  %s3 = inlined_call_operand.hbm [shape: f32[2,8,8,64], index: 3, kind: output, shape index: {}]
  %s4 = sld [smem:[#allocation0]]
  $region45: #{tpu_custom_call.1} parent=0
    _
  %s6 = ssub.s32 1, %s4
  %s7 = scalar_select 0, %s6, %s4
  $region1: #{tpu_custom_call.1} parent=0
    #allocation3 [shape = 'u8[32768]{0}', space=vmem, size = 0x8000, scoped, tag = 'output window, operand 0']
    #allocation4 [shape = 's32[2]{0}', space=sflag, size = 0x8, scoped, tag = 'scoped memory for tpu_custom_call.1']
    %8 = vsyncpa [#allocation4], 0
    %s9 = scalar_lea.sflag [#allocation4], 1
    %10 = vsyncpa %s9, 0
    loop: start=0, step=1, limit=6
    $region2: #{tpu_custom_call.1} parent=1 // loop_pre_header
      _
    $region3: #{tpu_custom_call.1} parent=1 // loop_header
      %s12 = sphi 0, %s16
      %p13 = scmp.ge.s32.totalorder %s12, 6
      %s19 = sphi 0, %s31
      %s20 = sphi 0, %s27
      %s21 = sphi 0, %s19
      %s22 = sphi 0, %s20
      %s23 = sphi 0, %s21
      %s24 = sphi 0, %s22
      %s34 = sphi 0, %s36
      %s37 = sphi 0, %s34
      %s38 = sphi 0, %s37
      %s54 = sphi 0, %s38
      %s58 = sphi 0, %s58
      %s60 = sphi 0, %s58
      %s61 = sphi 0, %s60
      %s75 = sphi 0, %s61
      %s79 = sphi 0, %s79
      %s81 = sphi 0, %s79
      %s82 = sphi 0, %s81
      %s96 = sphi 0, %s82
      %s104 = sphi 0, %s106
      %s107 = sphi 0, %s104
      %s108 = sphi 0, %s107
      %s124 = sphi 0, %s108
    $region4: #{tpu_custom_call.1} parent=1 // loop_header_branch
      %15 = sbr.rel (%p13) target = $region8
    $region5: #{tpu_custom_call.1} parent=1 // loop_body
      %s17 = ssub.s32 %s12, 1
      %s18 = ssub.s32 %s12, 2
      %s25 = sadd.s32 1, %s20
      %p26 = scmp.ge.s32.totalorder %s25, 2
      %s27 = scalar_select %p26, 0, %s25
      %s28 = sadd.s32 1, %s19
      %s29 = scalar_select %p26, %s28, %s19
      %p30 = scmp.ge.s32.totalorder %s29, 2
      %s31 = scalar_select %p30, 0, %s29
      %s32 = ssub.s32 %s19, %s31
      %p33 = scmp.eq.s32.totalorder %s32, 0
      %s35 = sadd.s32 %s34, 1
      %s36 = scalar_select %p33, %s34, %s35
      %p39 = pneg %p33
      %p40 = scmp.eq.s32.totalorder %s12, 3
      %p41 = por %p39, %p40
      %p42 = scmp.ne.s32.totalorder %s34, %s37
      %p43 = scmp.eq.s32.totalorder %s12, 0
      %p44 = por %p42, %p43
      %p45 = scmp.ne.s32.totalorder %s34, %s37
      %p46 = scmp.eq.s32.totalorder %s17, 3
      %p47 = por %p45, %p46
      %p48 = scmp.ne.s32.totalorder %s37, %s38
      %p49 = scmp.eq.s32.totalorder %s17, 0
      %p50 = por %p48, %p49
      %p51 = scmp.ne.s32.totalorder %s37, %s38
      %p52 = scmp.eq.s32.totalorder %s18, 3
      %p53 = por %p51, %p52
      %p55 = scmp.ne.s32.totalorder %s38, %s54
      %p56 = scmp.eq.s32.totalorder %s18, 0
      %p57 = por %p55, %p56
      %s59 = sadd.s32 %s58, 1
      %p62 = scmp.eq.s32.totalorder %s12, 3
      %p63 = scmp.ne.s32.totalorder %s58, %s60
      %p64 = scmp.eq.s32.totalorder %s12, 0
      %p65 = por %p63, %p64
      %p66 = scmp.ne.s32.totalorder %s58, %s60
      %p67 = scmp.eq.s32.totalorder %s17, 3
      %p68 = por %p66, %p67
      %p69 = scmp.ne.s32.totalorder %s60, %s61
      %p70 = scmp.eq.s32.totalorder %s17, 0
      %p71 = por %p69, %p70
      %p72 = scmp.ne.s32.totalorder %s60, %s61
      %p73 = scmp.eq.s32.totalorder %s18, 3
      %p74 = por %p72, %p73
      %p76 = scmp.ne.s32.totalorder %s61, %s75
      %p77 = scmp.eq.s32.totalorder %s18, 0
      %p78 = por %p76, %p77
      %s80 = sadd.s32 %s79, 1
      %p83 = scmp.eq.s32.totalorder %s12, 3
      %p84 = scmp.ne.s32.totalorder %s79, %s81
      %p85 = scmp.eq.s32.totalorder %s12, 0
      %p86 = por %p84, %p85
      %p87 = scmp.ne.s32.totalorder %s79, %s81
      %p88 = scmp.eq.s32.totalorder %s17, 3
      %p89 = por %p87, %p88
      %p90 = scmp.ne.s32.totalorder %s81, %s82
      %p91 = scmp.eq.s32.totalorder %s17, 0
      %p92 = por %p90, %p91
      %p93 = scmp.ne.s32.totalorder %s81, %s82
      %p94 = scmp.eq.s32.totalorder %s18, 3
      %p95 = por %p93, %p94
      %p97 = scmp.ne.s32.totalorder %s82, %s96
      %p98 = scmp.eq.s32.totalorder %s18, 0
      %p99 = por %p97, %p98
      %s100 = ssub.s32 %s19, %s31
      %s101 = ssub.s32 %s20, %s27
      %s102 = sor.u32 %s100, %s101
      %p103 = scmp.eq.s32.totalorder %s102, 0
      %s105 = sadd.s32 %s104, 1
      %s106 = scalar_select %p103, %s104, %s105
      %p109 = pneg %p103
      %p110 = scmp.eq.s32.totalorder %s12, 3
      %p111 = por %p109, %p110
      %p112 = scmp.ne.s32.totalorder %s104, %s107
      %p113 = scmp.eq.s32.totalorder %s12, 0
      %p114 = por %p112, %p113
      %p115 = scmp.ne.s32.totalorder %s104, %s107
      %p116 = scmp.eq.s32.totalorder %s17, 3
      %p117 = por %p115, %p116
      %p118 = scmp.ne.s32.totalorder %s107, %s108
      %p119 = scmp.eq.s32.totalorder %s17, 0
      %p120 = por %p118, %p119
      %p121 = scmp.ne.s32.totalorder %s107, %s108
      %p122 = scmp.eq.s32.totalorder %s18, 3
      %p123 = por %p121, %p122
      %p125 = scmp.ne.s32.totalorder %s108, %s124
      %p126 = scmp.eq.s32.totalorder %s18, 0
      %p127 = por %p125, %p126
      %p128 = scmp.le.s32.totalorder 1, %s12
      %p129 = scmp.lt.s32.totalorder %s12, 5
      %p130 = pnand %p128, %p129
      %p131 = pneg %p130
      // Predicated region
      $region9: #{tpu_custom_call.1} parent=5 // pred_check
        _
      $region10: #{tpu_custom_call.1} parent=5 // pred_check_branch
        %133 = sbr.rel (%p130) target = $region12
      $region11: #{tpu_custom_call.1} parent=5 // pred_region
        %s134 = ssub.s32 %s12, 1
        // Predicated region
        $region13: #{tpu_custom_call.1} parent=11 // pred_check
          %p135 = pneg %p71
        $region14: #{tpu_custom_call.1} parent=11 // pred_check_branch
          %137 = sbr.rel (%p135) target = $region16
        $region15: #{tpu_custom_call.1} parent=11 // pred_region
          _
        $region16: #{tpu_custom_call.1} parent=11 // pred_fallthru
          _
        // Predicated region
        $region17: #{tpu_custom_call.1} parent=11 // pred_check
          %p138 = pneg %p92
        $region18: #{tpu_custom_call.1} parent=11 // pred_check_branch
          %140 = sbr.rel (%p138) target = $region20
        $region19: #{tpu_custom_call.1} parent=11 // pred_region
          _
        $region20: #{tpu_custom_call.1} parent=11 // pred_fallthru
          _
      $region12: #{tpu_custom_call.1} parent=5 // pred_fallthru
        _
      %p141 = scmp.lt.s32.totalorder %s12, 4
      // Predicated region
      $region21: #{tpu_custom_call.1} parent=5 // pred_check
        %p142 = pneg %p141
      $region22: #{tpu_custom_call.1} parent=5 // pred_check_branch
        %144 = sbr.rel (%p142) target = $region24
      $region23: #{tpu_custom_call.1} parent=5 // pred_region
        // Predicated region
        $region25: #{tpu_custom_call.1} parent=23 // pred_check
          %p145 = pneg %p44
        $region26: #{tpu_custom_call.1} parent=23 // pred_check_branch
          %147 = sbr.rel (%p145) target = $region28
        $region27: #{tpu_custom_call.1} parent=23 // pred_region
          %p148 = scmp.lt.s32.totalorder %s19, 1
          %s149 = scalar_select %p148, %s19, 1
          %s150 = smul.addr %s149, 54
          %s151 = smul.addr %s150, 8
          %s152 = scalar_lea.vmem %s0, %s151
        $region28: #{tpu_custom_call.1} parent=23 // pred_fallthru
          _
      $region24: #{tpu_custom_call.1} parent=5 // pred_fallthru
        _
      %p153 = scmp.le.s32.totalorder 1, %s12
      %p154 = scmp.lt.s32.totalorder %s12, 5
      %p155 = pnand %p153, %p154
      %p156 = pneg %p155
      // Predicated region
      $region29: #{tpu_custom_call.1} parent=5 // pred_check
        _
      $region30: #{tpu_custom_call.1} parent=5 // pred_check_branch
        %158 = sbr.rel (%p155) target = $region32
      $region31: #{tpu_custom_call.1} parent=5 // pred_region
        %s159 = ssub.s32 %s12, 1
        %p160 = scmp.lt.s32.totalorder %s21, 1
        %s161 = scalar_select %p160, %s21, 1
        %s162 = smul.addr %s161, 54
        %s163 = smul.addr %s162, 8
        %s164 = scalar_lea.vmem %s0, %s163
        %p165 = pneg %p50
        %p166 = pneg %p47
        %p167 = pneg %p71
        %p168 = pneg %p68
        %p169 = pneg %p92
        %p170 = pneg %p89
        %p171 = pneg %p120
        %p172 = pneg %p117
        %s173 = sand.u32 %s107, 1
        %s174 = scalar_lea.sflag [#allocation4], %s173
        %s175 = sand.u32 %s107, 1
        %s176 = smul.addr %s175, 32
        %s177 = scalar_lea.vmem [#allocation3], %s176
        %p178 = scmp.lt.s32.totalorder %s21, 1
        %s179 = scalar_select %p178, %s21, 1
        %s180 = smul.addr %s179, 54
        %s181 = smul.addr %s180, 8
        %s182 = scalar_lea.vmem %s0, %s181
        %s183 = smul.u32 4, %s22
        %s184 = smul.u32 %s22, 8
        %s185 = smul.u32 %s184, 24
        %s186 = scalar_lea.vmem %s182, %s185
        %v187 = vld [vmem:[%s186] sm:$0xff]
        %v188 = vld [vmem:[%s186 + $0x8] sm:$0xff]
        %v189 = vld [vmem:[%s186 + $0x18] sm:$0xff]
        %v190 = vld [vmem:[%s186 + $0x20] sm:$0xff]
        %v191 = vld [vmem:[%s186 + $0x30] sm:$0xff]
        %v192 = vld [vmem:[%s186 + $0x38] sm:$0xff]
        %v193 = vld [vmem:[%s186 + $0x48] sm:$0xff]
        %v194 = vld [vmem:[%s186 + $0x50] sm:$0xff]
        %v195 = vld [vmem:[%s186 + $0x60] sm:$0xff]
        %v196 = vld [vmem:[%s186 + $0x68] sm:$0xff]
        %v197 = vld [vmem:[%s186 + $0x78] sm:$0xff]
        %v198 = vld [vmem:[%s186 + $0x80] sm:$0xff]
        %v199 = vld [vmem:[%s186 + $0x90] sm:$0xff]
        %v200 = vld [vmem:[%s186 + $0x98] sm:$0xff]
        %v201 = vld [vmem:[%s186 + $0xa8] sm:$0xff]
        %v202 = vld [vmem:[%s186 + $0xb0] sm:$0xff]
        %v203 = vld [vmem:[%s186 + $0x1] sm:$0xff]
        %v204 = vld [vmem:[%s186 + $0x9] sm:$0xff]
        %v205 = vld [vmem:[%s186 + $0x19] sm:$0xff]
        %v206 = vld [vmem:[%s186 + $0x21] sm:$0xff]
        %v207 = vld [vmem:[%s186 + $0x31] sm:$0xff]
        %v208 = vld [vmem:[%s186 + $0x39] sm:$0xff]
        %v209 = vld [vmem:[%s186 + $0x49] sm:$0xff]
        %v210 = vld [vmem:[%s186 + $0x51] sm:$0xff]
        %v211 = vld [vmem:[%s186 + $0x61] sm:$0xff]
        %v212 = vld [vmem:[%s186 + $0x69] sm:$0xff]
        %v213 = vld [vmem:[%s186 + $0x79] sm:$0xff]
        %v214 = vld [vmem:[%s186 + $0x81] sm:$0xff]
        %v215 = vld [vmem:[%s186 + $0x91] sm:$0xff]
        %v216 = vld [vmem:[%s186 + $0x99] sm:$0xff]
        %v217 = vld [vmem:[%s186 + $0xa9] sm:$0xff]
        %v218 = vld [vmem:[%s186 + $0xb1] sm:$0xff]
        %v219 = vld [vmem:[%s186 + $0x2] sm:$0xff]
        %v220 = vld [vmem:[%s186 + $0xa] sm:$0xff]
        %v221 = vld [vmem:[%s186 + $0x1a] sm:$0xff]
        %v222 = vld [vmem:[%s186 + $0x22] sm:$0xff]
        %v223 = vld [vmem:[%s186 + $0x32] sm:$0xff]
        %v224 = vld [vmem:[%s186 + $0x3a] sm:$0xff]
        %v225 = vld [vmem:[%s186 + $0x4a] sm:$0xff]
        %v226 = vld [vmem:[%s186 + $0x52] sm:$0xff]
        %v227 = vld [vmem:[%s186 + $0x62] sm:$0xff]
        %v228 = vld [vmem:[%s186 + $0x6a] sm:$0xff]
        %v229 = vld [vmem:[%s186 + $0x7a] sm:$0xff]
        %v230 = vld [vmem:[%s186 + $0x82] sm:$0xff]
        %v231 = vld [vmem:[%s186 + $0x92] sm:$0xff]
        %v232 = vld [vmem:[%s186 + $0x9a] sm:$0xff]
        %v233 = vld [vmem:[%s186 + $0xaa] sm:$0xff]
        %v234 = vld [vmem:[%s186 + $0xb2] sm:$0xff]
        %s235 = sadd.s32 %s184, 1
        %s236 = smul.u32 %s235, 24
        %s237 = scalar_lea.vmem %s182, %s236
        %v238 = vld [vmem:[%s237] sm:$0xff]
        %v239 = vld [vmem:[%s237 + $0x8] sm:$0xff]
        %v240 = vld [vmem:[%s237 + $0x18] sm:$0xff]
        %v241 = vld [vmem:[%s237 + $0x20] sm:$0xff]
        %v242 = vld [vmem:[%s237 + $0x30] sm:$0xff]
        %v243 = vld [vmem:[%s237 + $0x38] sm:$0xff]
        %v244 = vld [vmem:[%s237 + $0x48] sm:$0xff]
        %v245 = vld [vmem:[%s237 + $0x50] sm:$0xff]
        %v246 = vld [vmem:[%s237 + $0x60] sm:$0xff]
        %v247 = vld [vmem:[%s237 + $0x68] sm:$0xff]
        %v248 = vld [vmem:[%s237 + $0x78] sm:$0xff]
        %v249 = vld [vmem:[%s237 + $0x80] sm:$0xff]
        %v250 = vld [vmem:[%s237 + $0x90] sm:$0xff]
        %v251 = vld [vmem:[%s237 + $0x98] sm:$0xff]
        %v252 = vld [vmem:[%s237 + $0xa8] sm:$0xff]
        %v253 = vld [vmem:[%s237 + $0xb0] sm:$0xff]
        %v254 = vld [vmem:[%s237 + $0x1] sm:$0xff]
        %v255 = vld [vmem:[%s237 + $0x9] sm:$0xff]
        %v256 = vld [vmem:[%s237 + $0x19] sm:$0xff]
        %v257 = vld [vmem:[%s237 + $0x21] sm:$0xff]
        %v258 = vld [vmem:[%s237 + $0x31] sm:$0xff]
        %v259 = vld [vmem:[%s237 + $0x39] sm:$0xff]
        %v260 = vld [vmem:[%s237 + $0x49] sm:$0xff]
        %v261 = vld [vmem:[%s237 + $0x51] sm:$0xff]
        %v262 = vld [vmem:[%s237 + $0x61] sm:$0xff]
        %v263 = vld [vmem:[%s237 + $0x69] sm:$0xff]
        %v264 = vld [vmem:[%s237 + $0x79] sm:$0xff]
        %v265 = vld [vmem:[%s237 + $0x81] sm:$0xff]
        %v266 = vld [vmem:[%s237 + $0x91] sm:$0xff]
        %v267 = vld [vmem:[%s237 + $0x99] sm:$0xff]
        %v268 = vld [vmem:[%s237 + $0xa9] sm:$0xff]
        %v269 = vld [vmem:[%s237 + $0xb1] sm:$0xff]
        %v270 = vld [vmem:[%s237 + $0x2] sm:$0xff]
        %v271 = vld [vmem:[%s237 + $0xa] sm:$0xff]
        %v272 = vld [vmem:[%s237 + $0x1a] sm:$0xff]
        %v273 = vld [vmem:[%s237 + $0x22] sm:$0xff]
        %v274 = vld [vmem:[%s237 + $0x32] sm:$0xff]
        %v275 = vld [vmem:[%s237 + $0x3a] sm:$0xff]
        %v276 = vld [vmem:[%s237 + $0x4a] sm:$0xff]
        %v277 = vld [vmem:[%s237 + $0x52] sm:$0xff]
        %v278 = vld [vmem:[%s237 + $0x62] sm:$0xff]
        %v279 = vld [vmem:[%s237 + $0x6a] sm:$0xff]
        %v280 = vld [vmem:[%s237 + $0x7a] sm:$0xff]
        %v281 = vld [vmem:[%s237 + $0x82] sm:$0xff]
        %v282 = vld [vmem:[%s237 + $0x92] sm:$0xff]
        %v283 = vld [vmem:[%s237 + $0x9a] sm:$0xff]
        %v284 = vld [vmem:[%s237 + $0xaa] sm:$0xff]
        %v285 = vld [vmem:[%s237 + $0xb2] sm:$0xff]
        %s286 = sadd.s32 %s184, 2
        %s287 = smul.u32 %s286, 24
        %s288 = scalar_lea.vmem %s182, %s287
        %v289 = vld [vmem:[%s288] sm:$0xff]
        %v290 = vld [vmem:[%s288 + $0x8] sm:$0xff]
        %v291 = vld [vmem:[%s288 + $0x18] sm:$0xff]
        %v292 = vld [vmem:[%s288 + $0x20] sm:$0xff]
        %v293 = vld [vmem:[%s288 + $0x30] sm:$0xff]
        %v294 = vld [vmem:[%s288 + $0x38] sm:$0xff]
        %v295 = vld [vmem:[%s288 + $0x48] sm:$0xff]
        %v296 = vld [vmem:[%s288 + $0x50] sm:$0xff]
        %v297 = vld [vmem:[%s288 + $0x60] sm:$0xff]
        %v298 = vld [vmem:[%s288 + $0x68] sm:$0xff]
        %v299 = vld [vmem:[%s288 + $0x78] sm:$0xff]
        %v300 = vld [vmem:[%s288 + $0x80] sm:$0xff]
        %v301 = vld [vmem:[%s288 + $0x90] sm:$0xff]
        %v302 = vld [vmem:[%s288 + $0x98] sm:$0xff]
        %v303 = vld [vmem:[%s288 + $0xa8] sm:$0xff]
        %v304 = vld [vmem:[%s288 + $0xb0] sm:$0xff]
        %v305 = vld [vmem:[%s288 + $0x1] sm:$0xff]
        %v306 = vld [vmem:[%s288 + $0x9] sm:$0xff]
        %v307 = vld [vmem:[%s288 + $0x19] sm:$0xff]
        %v308 = vld [vmem:[%s288 + $0x21] sm:$0xff]
        %v309 = vld [vmem:[%s288 + $0x31] sm:$0xff]
        %v310 = vld [vmem:[%s288 + $0x39] sm:$0xff]
        %v311 = vld [vmem:[%s288 + $0x49] sm:$0xff]
        %v312 = vld [vmem:[%s288 + $0x51] sm:$0xff]
        %v313 = vld [vmem:[%s288 + $0x61] sm:$0xff]
        %v314 = vld [vmem:[%s288 + $0x69] sm:$0xff]
        %v315 = vld [vmem:[%s288 + $0x79] sm:$0xff]
        %v316 = vld [vmem:[%s288 + $0x81] sm:$0xff]
        %v317 = vld [vmem:[%s288 + $0x91] sm:$0xff]
        %v318 = vld [vmem:[%s288 + $0x99] sm:$0xff]
        %v319 = vld [vmem:[%s288 + $0xa9] sm:$0xff]
        %v320 = vld [vmem:[%s288 + $0xb1] sm:$0xff]
        %v321 = vld [vmem:[%s288 + $0x2] sm:$0xff]
        %v322 = vld [vmem:[%s288 + $0xa] sm:$0xff]
        %v323 = vld [vmem:[%s288 + $0x1a] sm:$0xff]
        %v324 = vld [vmem:[%s288 + $0x22] sm:$0xff]
        %v325 = vld [vmem:[%s288 + $0x32] sm:$0xff]
        %v326 = vld [vmem:[%s288 + $0x3a] sm:$0xff]
        %v327 = vld [vmem:[%s288 + $0x4a] sm:$0xff]
        %v328 = vld [vmem:[%s288 + $0x52] sm:$0xff]
        %v329 = vld [vmem:[%s288 + $0x62] sm:$0xff]
        %v330 = vld [vmem:[%s288 + $0x6a] sm:$0xff]
        %v331 = vld [vmem:[%s288 + $0x7a] sm:$0xff]
        %v332 = vld [vmem:[%s288 + $0x82] sm:$0xff]
        %v333 = vld [vmem:[%s288 + $0x92] sm:$0xff]
        %v334 = vld [vmem:[%s288 + $0x9a] sm:$0xff]
        %v335 = vld [vmem:[%s288 + $0xaa] sm:$0xff]
        %v336 = vld [vmem:[%s288 + $0xb2] sm:$0xff]
        %353 = vrot.lane.b32.xlu0 %v203, 3
        %v354 = vpop.permute.xlu0 %353
        %355 = vrot.lane.b32.xlu0 %v204, 3
        %v356 = vpop.permute.xlu0 %355
        %357 = vrot.lane.b32.xlu0 %v205, 3
        %v358 = vpop.permute.xlu0 %357
        %359 = vrot.lane.b32.xlu0 %v206, 3
        %v360 = vpop.permute.xlu0 %359
        %361 = vrot.lane.b32.xlu0 %v207, 3
        %v362 = vpop.permute.xlu0 %361
        %363 = vrot.lane.b32.xlu0 %v208, 3
        %v364 = vpop.permute.xlu0 %363
        %365 = vrot.lane.b32.xlu0 %v209, 3
        %v366 = vpop.permute.xlu0 %365
        %367 = vrot.lane.b32.xlu0 %v210, 3
        %v368 = vpop.permute.xlu0 %367
        %369 = vrot.lane.b32.xlu0 %v211, 3
        %v370 = vpop.permute.xlu0 %369
        %371 = vrot.lane.b32.xlu0 %v212, 3
        %v372 = vpop.permute.xlu0 %371
        %373 = vrot.lane.b32.xlu0 %v213, 3
        %v374 = vpop.permute.xlu0 %373
        %375 = vrot.lane.b32.xlu0 %v214, 3
        %v376 = vpop.permute.xlu0 %375
        %377 = vrot.lane.b32.xlu0 %v215, 3
        %v378 = vpop.permute.xlu0 %377
        %379 = vrot.lane.b32.xlu0 %v216, 3
        %v380 = vpop.permute.xlu0 %379
        %381 = vrot.lane.b32.xlu0 %v217, 3
        %v382 = vpop.permute.xlu0 %381
        %383 = vrot.lane.b32.xlu0 %v218, 3
        %v384 = vpop.permute.xlu0 %383
        %417 = vrot.lane.b32.xlu0 %v219, 6
        %v418 = vpop.permute.xlu0 %417
        %419 = vrot.lane.b32.xlu0 %v220, 6
        %v420 = vpop.permute.xlu0 %419
        %421 = vrot.lane.b32.xlu0 %v221, 6
        %v422 = vpop.permute.xlu0 %421
        %423 = vrot.lane.b32.xlu0 %v222, 6
        %v424 = vpop.permute.xlu0 %423
        %425 = vrot.lane.b32.xlu0 %v223, 6
        %v426 = vpop.permute.xlu0 %425
        %427 = vrot.lane.b32.xlu0 %v224, 6
        %v428 = vpop.permute.xlu0 %427
        %429 = vrot.lane.b32.xlu0 %v225, 6
        %v430 = vpop.permute.xlu0 %429
        %431 = vrot.lane.b32.xlu0 %v226, 6
        %v432 = vpop.permute.xlu0 %431
        %433 = vrot.lane.b32.xlu0 %v227, 6
        %v434 = vpop.permute.xlu0 %433
        %435 = vrot.lane.b32.xlu0 %v228, 6
        %v436 = vpop.permute.xlu0 %435
        %437 = vrot.lane.b32.xlu0 %v229, 6
        %v438 = vpop.permute.xlu0 %437
        %439 = vrot.lane.b32.xlu0 %v230, 6
        %v440 = vpop.permute.xlu0 %439
        %441 = vrot.lane.b32.xlu0 %v231, 6
        %v442 = vpop.permute.xlu0 %441
        %443 = vrot.lane.b32.xlu0 %v232, 6
        %v444 = vpop.permute.xlu0 %443
        %445 = vrot.lane.b32.xlu0 %v233, 6
        %v446 = vpop.permute.xlu0 %445
        %447 = vrot.lane.b32.xlu0 %v234, 6
        %v448 = vpop.permute.xlu0 %447
        %481 = vrot.lane.b32.xlu0 %v238, 9
        %v482 = vpop.permute.xlu0 %481
        %483 = vrot.lane.b32.xlu0 %v239, 9
        %v484 = vpop.permute.xlu0 %483
        %485 = vrot.lane.b32.xlu0 %v240, 9
        %v486 = vpop.permute.xlu0 %485
        %487 = vrot.lane.b32.xlu0 %v241, 9
        %v488 = vpop.permute.xlu0 %487
        %489 = vrot.lane.b32.xlu0 %v242, 9
        %v490 = vpop.permute.xlu0 %489
        %491 = vrot.lane.b32.xlu0 %v243, 9
        %v492 = vpop.permute.xlu0 %491
        %493 = vrot.lane.b32.xlu0 %v244, 9
        %v494 = vpop.permute.xlu0 %493
        %495 = vrot.lane.b32.xlu0 %v245, 9
        %v496 = vpop.permute.xlu0 %495
        %497 = vrot.lane.b32.xlu0 %v246, 9
        %v498 = vpop.permute.xlu0 %497
        %499 = vrot.lane.b32.xlu0 %v247, 9
        %v500 = vpop.permute.xlu0 %499
        %501 = vrot.lane.b32.xlu0 %v248, 9
        %v502 = vpop.permute.xlu0 %501
        %503 = vrot.lane.b32.xlu0 %v249, 9
        %v504 = vpop.permute.xlu0 %503
        %505 = vrot.lane.b32.xlu0 %v250, 9
        %v506 = vpop.permute.xlu0 %505
        %507 = vrot.lane.b32.xlu0 %v251, 9
        %v508 = vpop.permute.xlu0 %507
        %509 = vrot.lane.b32.xlu0 %v252, 9
        %v510 = vpop.permute.xlu0 %509
        %511 = vrot.lane.b32.xlu0 %v253, 9
        %v512 = vpop.permute.xlu0 %511
        %545 = vrot.lane.b32.xlu0 %v254, 12
        %v546 = vpop.permute.xlu0 %545
        %547 = vrot.lane.b32.xlu0 %v255, 12
        %v548 = vpop.permute.xlu0 %547
        %549 = vrot.lane.b32.xlu0 %v256, 12
        %v550 = vpop.permute.xlu0 %549
        %551 = vrot.lane.b32.xlu0 %v257, 12
        %v552 = vpop.permute.xlu0 %551
        %553 = vrot.lane.b32.xlu0 %v258, 12
        %v554 = vpop.permute.xlu0 %553
        %555 = vrot.lane.b32.xlu0 %v259, 12
        %v556 = vpop.permute.xlu0 %555
        %557 = vrot.lane.b32.xlu0 %v260, 12
        %v558 = vpop.permute.xlu0 %557
        %559 = vrot.lane.b32.xlu0 %v261, 12
        %v560 = vpop.permute.xlu0 %559
        %561 = vrot.lane.b32.xlu0 %v262, 12
        %v562 = vpop.permute.xlu0 %561
        %563 = vrot.lane.b32.xlu0 %v263, 12
        %v564 = vpop.permute.xlu0 %563
        %565 = vrot.lane.b32.xlu0 %v264, 12
        %v566 = vpop.permute.xlu0 %565
        %567 = vrot.lane.b32.xlu0 %v265, 12
        %v568 = vpop.permute.xlu0 %567
        %569 = vrot.lane.b32.xlu0 %v266, 12
        %v570 = vpop.permute.xlu0 %569
        %571 = vrot.lane.b32.xlu0 %v267, 12
        %v572 = vpop.permute.xlu0 %571
        %573 = vrot.lane.b32.xlu0 %v268, 12
        %v574 = vpop.permute.xlu0 %573
        %575 = vrot.lane.b32.xlu0 %v269, 12
        %v576 = vpop.permute.xlu0 %575
        %609 = vrot.lane.b32.xlu0 %v270, 15
        %v610 = vpop.permute.xlu0 %609
        %611 = vrot.lane.b32.xlu0 %v271, 15
        %v612 = vpop.permute.xlu0 %611
        %613 = vrot.lane.b32.xlu0 %v272, 15
        %v614 = vpop.permute.xlu0 %613
        %615 = vrot.lane.b32.xlu0 %v273, 15
        %v616 = vpop.permute.xlu0 %615
        %617 = vrot.lane.b32.xlu0 %v274, 15
        %v618 = vpop.permute.xlu0 %617
        %619 = vrot.lane.b32.xlu0 %v275, 15
        %v620 = vpop.permute.xlu0 %619
        %621 = vrot.lane.b32.xlu0 %v276, 15
        %v622 = vpop.permute.xlu0 %621
        %623 = vrot.lane.b32.xlu0 %v277, 15
        %v624 = vpop.permute.xlu0 %623
        %625 = vrot.lane.b32.xlu0 %v278, 15
        %v626 = vpop.permute.xlu0 %625
        %627 = vrot.lane.b32.xlu0 %v279, 15
        %v628 = vpop.permute.xlu0 %627
        %629 = vrot.lane.b32.xlu0 %v280, 15
        %v630 = vpop.permute.xlu0 %629
        %631 = vrot.lane.b32.xlu0 %v281, 15
        %v632 = vpop.permute.xlu0 %631
        %633 = vrot.lane.b32.xlu0 %v282, 15
        %v634 = vpop.permute.xlu0 %633
        %635 = vrot.lane.b32.xlu0 %v283, 15
        %v636 = vpop.permute.xlu0 %635
        %637 = vrot.lane.b32.xlu0 %v284, 15
        %v638 = vpop.permute.xlu0 %637
        %639 = vrot.lane.b32.xlu0 %v285, 15
        %v640 = vpop.permute.xlu0 %639
        %673 = vrot.lane.b32.xlu0 %v289, 18
        %v674 = vpop.permute.xlu0 %673
        %675 = vrot.lane.b32.xlu0 %v290, 18
        %v676 = vpop.permute.xlu0 %675
        %677 = vrot.lane.b32.xlu0 %v291, 18
        %v678 = vpop.permute.xlu0 %677
        %679 = vrot.lane.b32.xlu0 %v292, 18
        %v680 = vpop.permute.xlu0 %679
        %681 = vrot.lane.b32.xlu0 %v293, 18
        %v682 = vpop.permute.xlu0 %681
        %683 = vrot.lane.b32.xlu0 %v294, 18
        %v684 = vpop.permute.xlu0 %683
        %685 = vrot.lane.b32.xlu0 %v295, 18
        %v686 = vpop.permute.xlu0 %685
        %687 = vrot.lane.b32.xlu0 %v296, 18
        %v688 = vpop.permute.xlu0 %687
        %689 = vrot.lane.b32.xlu0 %v297, 18
        %v690 = vpop.permute.xlu0 %689
        %691 = vrot.lane.b32.xlu0 %v298, 18
        %v692 = vpop.permute.xlu0 %691
        %693 = vrot.lane.b32.xlu0 %v299, 18
        %v694 = vpop.permute.xlu0 %693
        %695 = vrot.lane.b32.xlu0 %v300, 18
        %v696 = vpop.permute.xlu0 %695
        %697 = vrot.lane.b32.xlu0 %v301, 18
        %v698 = vpop.permute.xlu0 %697
        %699 = vrot.lane.b32.xlu0 %v302, 18
        %v700 = vpop.permute.xlu0 %699
        %701 = vrot.lane.b32.xlu0 %v303, 18
        %v702 = vpop.permute.xlu0 %701
        %703 = vrot.lane.b32.xlu0 %v304, 18
        %v704 = vpop.permute.xlu0 %703
        %737 = vrot.lane.b32.xlu0 %v305, 21
        %v738 = vpop.permute.xlu0 %737
        %739 = vrot.lane.b32.xlu0 %v306, 21
        %v740 = vpop.permute.xlu0 %739
        %741 = vrot.lane.b32.xlu0 %v307, 21
        %v742 = vpop.permute.xlu0 %741
        %743 = vrot.lane.b32.xlu0 %v308, 21
        %v744 = vpop.permute.xlu0 %743
        %745 = vrot.lane.b32.xlu0 %v309, 21
        %v746 = vpop.permute.xlu0 %745
        %747 = vrot.lane.b32.xlu0 %v310, 21
        %v748 = vpop.permute.xlu0 %747
        %749 = vrot.lane.b32.xlu0 %v311, 21
        %v750 = vpop.permute.xlu0 %749
        %751 = vrot.lane.b32.xlu0 %v312, 21
        %v752 = vpop.permute.xlu0 %751
        %753 = vrot.lane.b32.xlu0 %v313, 21
        %v754 = vpop.permute.xlu0 %753
        %755 = vrot.lane.b32.xlu0 %v314, 21
        %v756 = vpop.permute.xlu0 %755
        %757 = vrot.lane.b32.xlu0 %v315, 21
        %v758 = vpop.permute.xlu0 %757
        %759 = vrot.lane.b32.xlu0 %v316, 21
        %v760 = vpop.permute.xlu0 %759
        %761 = vrot.lane.b32.xlu0 %v317, 21
        %v762 = vpop.permute.xlu0 %761
        %763 = vrot.lane.b32.xlu0 %v318, 21
        %v764 = vpop.permute.xlu0 %763
        %765 = vrot.lane.b32.xlu0 %v319, 21
        %v766 = vpop.permute.xlu0 %765
        %767 = vrot.lane.b32.xlu0 %v320, 21
        %v768 = vpop.permute.xlu0 %767
        %801 = vrot.lane.b32.xlu0 %v321, 24
        %v802 = vpop.permute.xlu0 %801
        %803 = vrot.lane.b32.xlu0 %v322, 24
        %v804 = vpop.permute.xlu0 %803
        %805 = vrot.lane.b32.xlu0 %v323, 24
        %v806 = vpop.permute.xlu0 %805
        %807 = vrot.lane.b32.xlu0 %v324, 24
        %v808 = vpop.permute.xlu0 %807
        %809 = vrot.lane.b32.xlu0 %v325, 24
        %v810 = vpop.permute.xlu0 %809
        %811 = vrot.lane.b32.xlu0 %v326, 24
        %v812 = vpop.permute.xlu0 %811
        %813 = vrot.lane.b32.xlu0 %v327, 24
        %v814 = vpop.permute.xlu0 %813
        %815 = vrot.lane.b32.xlu0 %v328, 24
        %v816 = vpop.permute.xlu0 %815
        %817 = vrot.lane.b32.xlu0 %v329, 24
        %v818 = vpop.permute.xlu0 %817
        %819 = vrot.lane.b32.xlu0 %v330, 24
        %v820 = vpop.permute.xlu0 %819
        %821 = vrot.lane.b32.xlu0 %v331, 24
        %v822 = vpop.permute.xlu0 %821
        %823 = vrot.lane.b32.xlu0 %v332, 24
        %v824 = vpop.permute.xlu0 %823
        %825 = vrot.lane.b32.xlu0 %v333, 24
        %v826 = vpop.permute.xlu0 %825
        %827 = vrot.lane.b32.xlu0 %v334, 24
        %v828 = vpop.permute.xlu0 %827
        %829 = vrot.lane.b32.xlu0 %v335, 24
        %v830 = vpop.permute.xlu0 %829
        %831 = vrot.lane.b32.xlu0 %v336, 24
        %v832 = vpop.permute.xlu0 %831
        %vm849 = vcmask 23552
        %v850 = vsel %vm849, %v187, %v354
        %v851 = vsel %vm849, %v188, %v356
        %v852 = vsel %vm849, %v189, %v358
        %v853 = vsel %vm849, %v190, %v360
        %v854 = vsel %vm849, %v191, %v362
        %v855 = vsel %vm849, %v192, %v364
        %v856 = vsel %vm849, %v193, %v366
        %v857 = vsel %vm849, %v194, %v368
        %v858 = vsel %vm849, %v195, %v370
        %v859 = vsel %vm849, %v196, %v372
        %v860 = vsel %vm849, %v197, %v374
        %v861 = vsel %vm849, %v198, %v376
        %v862 = vsel %vm849, %v199, %v378
        %v863 = vsel %vm849, %v200, %v380
        %v864 = vsel %vm849, %v201, %v382
        %v865 = vsel %vm849, %v202, %v384
        %vm866 = vcmask 48128
        %v867 = vsel %vm866, %v850, %v418
        %v868 = vsel %vm866, %v851, %v420
        %v869 = vsel %vm866, %v852, %v422
        %v870 = vsel %vm866, %v853, %v424
        %v871 = vsel %vm866, %v854, %v426
        %v872 = vsel %vm866, %v855, %v428
        %v873 = vsel %vm866, %v856, %v430
        %v874 = vsel %vm866, %v857, %v432
        %v875 = vsel %vm866, %v858, %v434
        %v876 = vsel %vm866, %v859, %v436
        %v877 = vsel %vm866, %v860, %v438
        %v878 = vsel %vm866, %v861, %v440
        %v879 = vsel %vm866, %v862, %v442
        %v880 = vsel %vm866, %v863, %v444
        %v881 = vsel %vm866, %v864, %v446
        %v882 = vsel %vm866, %v865, %v448
        %vm883 = vcmask 72704
        %v884 = vsel %vm883, %v867, %v482
        %v885 = vsel %vm883, %v868, %v484
        %v886 = vsel %vm883, %v869, %v486
        %v887 = vsel %vm883, %v870, %v488
        %v888 = vsel %vm883, %v871, %v490
        %v889 = vsel %vm883, %v872, %v492
        %v890 = vsel %vm883, %v873, %v494
        %v891 = vsel %vm883, %v874, %v496
        %v892 = vsel %vm883, %v875, %v498
        %v893 = vsel %vm883, %v876, %v500
        %v894 = vsel %vm883, %v877, %v502
        %v895 = vsel %vm883, %v878, %v504
        %v896 = vsel %vm883, %v879, %v506
        %v897 = vsel %vm883, %v880, %v508
        %v898 = vsel %vm883, %v881, %v510
        %v899 = vsel %vm883, %v882, %v512
        %vm900 = vcmask 97280
        %v901 = vsel %vm900, %v884, %v546
        %v902 = vsel %vm900, %v885, %v548
        %v903 = vsel %vm900, %v886, %v550
        %v904 = vsel %vm900, %v887, %v552
        %v905 = vsel %vm900, %v888, %v554
        %v906 = vsel %vm900, %v889, %v556
        %v907 = vsel %vm900, %v890, %v558
        %v908 = vsel %vm900, %v891, %v560
        %v909 = vsel %vm900, %v892, %v562
        %v910 = vsel %vm900, %v893, %v564
        %v911 = vsel %vm900, %v894, %v566
        %v912 = vsel %vm900, %v895, %v568
        %v913 = vsel %vm900, %v896, %v570
        %v914 = vsel %vm900, %v897, %v572
        %v915 = vsel %vm900, %v898, %v574
        %v916 = vsel %vm900, %v899, %v576
        %vm917 = vcmask 121856
        %v918 = vsel %vm917, %v901, %v610
        %v919 = vsel %vm917, %v902, %v612
        %v920 = vsel %vm917, %v903, %v614
        %v921 = vsel %vm917, %v904, %v616
        %v922 = vsel %vm917, %v905, %v618
        %v923 = vsel %vm917, %v906, %v620
        %v924 = vsel %vm917, %v907, %v622
        %v925 = vsel %vm917, %v908, %v624
        %v926 = vsel %vm917, %v909, %v626
        %v927 = vsel %vm917, %v910, %v628
        %v928 = vsel %vm917, %v911, %v630
        %v929 = vsel %vm917, %v912, %v632
        %v930 = vsel %vm917, %v913, %v634
        %v931 = vsel %vm917, %v914, %v636
        %v932 = vsel %vm917, %v915, %v638
        %v933 = vsel %vm917, %v916, %v640
        %vm934 = vcmask 146432
        %v935 = vsel %vm934, %v918, %v674
        %v936 = vsel %vm934, %v919, %v676
        %v937 = vsel %vm934, %v920, %v678
        %v938 = vsel %vm934, %v921, %v680
        %v939 = vsel %vm934, %v922, %v682
        %v940 = vsel %vm934, %v923, %v684
        %v941 = vsel %vm934, %v924, %v686
        %v942 = vsel %vm934, %v925, %v688
        %v943 = vsel %vm934, %v926, %v690
        %v944 = vsel %vm934, %v927, %v692
        %v945 = vsel %vm934, %v928, %v694
        %v946 = vsel %vm934, %v929, %v696
        %v947 = vsel %vm934, %v930, %v698
        %v948 = vsel %vm934, %v931, %v700
        %v949 = vsel %vm934, %v932, %v702
        %v950 = vsel %vm934, %v933, %v704
        %vm951 = vcmask 171008
        %v952 = vsel %vm951, %v935, %v738
        %v953 = vsel %vm951, %v936, %v740
        %v954 = vsel %vm951, %v937, %v742
        %v955 = vsel %vm951, %v938, %v744
        %v956 = vsel %vm951, %v939, %v746
        %v957 = vsel %vm951, %v940, %v748
        %v958 = vsel %vm951, %v941, %v750
        %v959 = vsel %vm951, %v942, %v752
        %v960 = vsel %vm951, %v943, %v754
        %v961 = vsel %vm951, %v944, %v756
        %v962 = vsel %vm951, %v945, %v758
        %v963 = vsel %vm951, %v946, %v760
        %v964 = vsel %vm951, %v947, %v762
        %v965 = vsel %vm951, %v948, %v764
        %v966 = vsel %vm951, %v949, %v766
        %v967 = vsel %vm951, %v950, %v768
        %vm968 = vcmask 195584
        %v969 = vsel %vm968, %v952, %v802
        %v970 = vsel %vm968, %v953, %v804
        %v971 = vsel %vm968, %v954, %v806
        %v972 = vsel %vm968, %v955, %v808
        %v973 = vsel %vm968, %v956, %v810
        %v974 = vsel %vm968, %v957, %v812
        %v975 = vsel %vm968, %v958, %v814
        %v976 = vsel %vm968, %v959, %v816
        %v977 = vsel %vm968, %v960, %v818
        %v978 = vsel %vm968, %v961, %v820
        %v979 = vsel %vm968, %v962, %v822
        %v980 = vsel %vm968, %v963, %v824
        %v981 = vsel %vm968, %v964, %v826
        %v982 = vsel %vm968, %v965, %v828
        %v983 = vsel %vm968, %v966, %v830
        %v984 = vsel %vm968, %v967, %v832
        %v985 = vld [vmem:[%s1] sm:$0xff]
        %v986 = vld [vmem:[%s1 + $0x8] sm:$0xff]
        %v987 = vld [vmem:[%s1 + $0x10] sm:$0xff]
        %v988 = vld [vmem:[%s1 + $0x18] sm:$0x7]
        %v989 = vld [vmem:[%s2] sm:$0x1]
        %v991 = vperm.slane %v989, 0
        %vm993 = vcmask 220160
        %v995 = vsel %vm993, %v969, 0
        %v998 = vsel %vm993, %v970, 0
        %v1001 = vsel %vm993, %v971, 0
        %v1004 = vsel %vm993, %v972, 0
        %v1007 = vsel %vm993, %v973, 0
        %v1010 = vsel %vm993, %v974, 0
        %v1013 = vsel %vm993, %v975, 0
        %v1016 = vsel %vm993, %v976, 0
        %v1019 = vsel %vm993, %v977, 0
        %v1022 = vsel %vm993, %v978, 0
        %v1025 = vsel %vm993, %v979, 0
        %v1028 = vsel %vm993, %v980, 0
        %v1031 = vsel %vm993, %v981, 0
        %v1034 = vsel %vm993, %v982, 0
        %v1037 = vsel %vm993, %v983, 0
        %v1040 = vsel %vm993, %v984, 0
        %vm1042 = vcmask 1042432
        %v1044 = vsel %vm1042, %v988, 0
        %1046 = vmatpush.msra.mxu0 0.0
        %1047 = vmatpush.msra.mxu0 0.0
        %1048 = vmatpush.msra.mxu0 0.0
        %1049 = vmatpush.msra.mxu0 0.0
        %1050 = vmatpush.msra.mxu0 0.0
        %1051 = vmatpush.msra.mxu0 0.0
        %1052 = vmatpush.msra.mxu0 0.0
        %1053 = vmatpush.msra.mxu0 0.0
        %1054 = vmatpush.msra.mxu0 0.0
        %1055 = vmatpush.msra.mxu0 0.0
        %1056 = vmatpush.msra.mxu0 0.0
        %1057 = vmatpush.msra.mxu0 0.0
        %1058 = vmatpush.msra.mxu0 %v1044
        %1059 = vmatpush.msra.mxu0 %v987
        %1060 = vmatpush.msra.mxu0 %v986
        %1061 = vmatpush.msra.mxu0 %v985
        %1062 = vmatmul.f32.gmra.mxu0 %v995
        %v1063 = vpop.f32.mrf.mxu0
        %v1064 = vadd.f32 %v991, %v1063
        %1065 = vmatmul.f32.gmra.mxu0 %v998
        %v1066 = vpop.f32.mrf.mxu0
        %v1067 = vadd.f32 %v991, %v1066
        %1068 = vmatmul.f32.gmra.mxu0 %v1001
        %v1069 = vpop.f32.mrf.mxu0
        %v1070 = vadd.f32 %v991, %v1069
        %1071 = vmatmul.f32.gmra.mxu0 %v1004
        %v1072 = vpop.f32.mrf.mxu0
        %v1073 = vadd.f32 %v991, %v1072
        %1074 = vmatmul.f32.gmra.mxu0 %v1007
        %v1075 = vpop.f32.mrf.mxu0
        %v1076 = vadd.f32 %v991, %v1075
        %1077 = vmatmul.f32.gmra.mxu0 %v1010
        %v1078 = vpop.f32.mrf.mxu0
        %v1079 = vadd.f32 %v991, %v1078
        %1080 = vmatmul.f32.gmra.mxu0 %v1013
        %v1081 = vpop.f32.mrf.mxu0
        %v1082 = vadd.f32 %v991, %v1081
        %1083 = vmatmul.f32.gmra.mxu0 %v1016
        %v1084 = vpop.f32.mrf.mxu0
        %v1085 = vadd.f32 %v991, %v1084
        %1086 = vmatmul.f32.gmra.mxu0 %v1019
        %v1087 = vpop.f32.mrf.mxu0
        %v1088 = vadd.f32 %v991, %v1087
        %1089 = vmatmul.f32.gmra.mxu0 %v1022
        %v1090 = vpop.f32.mrf.mxu0
        %v1091 = vadd.f32 %v991, %v1090
        %1092 = vmatmul.f32.gmra.mxu0 %v1025
        %v1093 = vpop.f32.mrf.mxu0
        %v1094 = vadd.f32 %v991, %v1093
        %1095 = vmatmul.f32.gmra.mxu0 %v1028
        %v1096 = vpop.f32.mrf.mxu0
        %v1097 = vadd.f32 %v991, %v1096
        %1098 = vmatmul.f32.gmra.mxu0 %v1031
        %v1099 = vpop.f32.mrf.mxu0
        %v1100 = vadd.f32 %v991, %v1099
        %1101 = vmatmul.f32.gmra.mxu0 %v1034
        %v1102 = vpop.f32.mrf.mxu0
        %v1103 = vadd.f32 %v991, %v1102
        %1104 = vmatmul.f32.gmra.mxu0 %v1037
        %v1105 = vpop.f32.mrf.mxu0
        %v1106 = vadd.f32 %v991, %v1105
        %1107 = vmatmul.f32.gmra.mxu0 %v1040
        %v1108 = vpop.f32.mrf.mxu0
        %v1109 = vadd.f32 %v991, %v1108
        %1110 = vdwg.mxu0
        %v1111 = vmax.f32 %v1064, 0.0
        %v1112 = vmax.f32 %v1067, 0.0
        %v1113 = vmax.f32 %v1070, 0.0
        %v1114 = vmax.f32 %v1073, 0.0
        %v1115 = vmax.f32 %v1076, 0.0
        %v1116 = vmax.f32 %v1079, 0.0
        %v1117 = vmax.f32 %v1082, 0.0
        %v1118 = vmax.f32 %v1085, 0.0
        %v1119 = vmax.f32 %v1088, 0.0
        %v1120 = vmax.f32 %v1091, 0.0
        %v1121 = vmax.f32 %v1094, 0.0
        %v1122 = vmax.f32 %v1097, 0.0
        %v1123 = vmax.f32 %v1100, 0.0
        %v1124 = vmax.f32 %v1103, 0.0
        %v1125 = vmax.f32 %v1106, 0.0
        %v1126 = vmax.f32 %v1109, 0.0
        %vm1127 = vcmask 523264
        %v1128 = vsel %vm1127, %v1111, -inf
        %v1129 = vsel %vm1127, %v1113, -inf
        %v1130 = vmax.f32 %v1128, %v1129
        %v1131 = vsel %vm1127, %v1112, -inf
        %v1132 = vsel %vm1127, %v1114, -inf
        %v1133 = vmax.f32 %v1131, %v1132
        %v1134 = vsel %vm1127, %v1115, -inf
        %v1135 = vsel %vm1127, %v1117, -inf
        %v1136 = vmax.f32 %v1134, %v1135
        %v1137 = vsel %vm1127, %v1116, -inf
        %v1138 = vsel %vm1127, %v1118, -inf
        %v1139 = vmax.f32 %v1137, %v1138
        %v1140 = vsel %vm1127, %v1119, -inf
        %v1141 = vsel %vm1127, %v1121, -inf
        %v1142 = vmax.f32 %v1140, %v1141
        %v1143 = vsel %vm1127, %v1120, -inf
        %v1144 = vsel %vm1127, %v1122, -inf
        %v1145 = vmax.f32 %v1143, %v1144
        %v1146 = vsel %vm1127, %v1123, -inf
        %v1147 = vsel %vm1127, %v1125, -inf
        %v1148 = vmax.f32 %v1146, %v1147
        %v1149 = vsel %vm1127, %v1124, -inf
        %v1150 = vsel %vm1127, %v1126, -inf
        %v1151 = vmax.f32 %v1149, %v1150
        %1152 = vst.msk [vmem:[#allocation2] sm:$0xff] %vm1127, %v1130
        %1153 = vst.msk [vmem:[#allocation2 + $0x8] sm:$0xff] %vm1127, %v1133
        %1154 = vst.msk [vmem:[#allocation2 + $0x10] sm:$0xff] %vm1127, %v1136
        %1155 = vst.msk [vmem:[#allocation2 + $0x18] sm:$0xff] %vm1127, %v1139
        %1156 = vst.msk [vmem:[#allocation2 + $0x20] sm:$0xff] %vm1127, %v1142
        %1157 = vst.msk [vmem:[#allocation2 + $0x28] sm:$0xff] %vm1127, %v1145
        %1158 = vst.msk [vmem:[#allocation2 + $0x30] sm:$0xff] %vm1127, %v1148
        %1159 = vst.msk [vmem:[#allocation2 + $0x38] sm:$0xff] %vm1127, %v1151
        %v1160 = vld [vmem:[#allocation2] ss:$2 sm:$0xff]
        %s1161 = scalar_lea.vmem [#allocation2], 16
        %v1162 = vld [vmem:[%s1161] ss:$2 sm:$0xff]
        %s1163 = scalar_lea.vmem [#allocation2], 32
        %v1164 = vld [vmem:[%s1163] ss:$2 sm:$0xff]
        %s1165 = scalar_lea.vmem [#allocation2], 48
        %v1166 = vld [vmem:[%s1165] ss:$2 sm:$0xff]
        %s1167 = scalar_lea.vmem [#allocation2], 1
        %v1168 = vld [vmem:[%s1167] ss:$2 sm:$0xff]
        %s1169 = scalar_lea.vmem [#allocation2], 17
        %v1170 = vld [vmem:[%s1169] ss:$2 sm:$0xff]
        %s1171 = scalar_lea.vmem [#allocation2], 33
        %v1172 = vld [vmem:[%s1171] ss:$2 sm:$0xff]
        %s1173 = scalar_lea.vmem [#allocation2], 49
        %v1174 = vld [vmem:[%s1173] ss:$2 sm:$0xff]
        %v1175 = vmax.f32 %v1160, %v1168
        %v1176 = vmax.f32 %v1162, %v1170
        %v1177 = vmax.f32 %v1164, %v1172
        %v1178 = vmax.f32 %v1166, %v1174
        %1179 = vst.msk [vmem:[%s177] sm:$0xff] %vm1127, %v1175
        %1180 = vst.msk [vmem:[%s177 + $0x8] sm:$0xff] %vm1127, %v1176
        %1181 = vst.msk [vmem:[%s177 + $0x10] sm:$0xff] %vm1127, %v1177
        %1182 = vst.msk [vmem:[%s177 + $0x18] sm:$0xff] %vm1127, %v1178
        %s1183 = sand.u32 %s107, 1
        %s1184 = scalar_lea.sflag [#allocation4], %s1183
        %s1185 = sand.u32 %s107, 1
        %s1186 = smul.addr %s1185, 32
        %s1187 = scalar_lea.vmem [#allocation3], %s1186
        // Predicated region
        $region33: #{tpu_custom_call.1} parent=31 // pred_check
          %p1188 = pneg %p117
        $region34: #{tpu_custom_call.1} parent=31 // pred_check_branch
          %1190 = sbr.rel (%p1188) target = $region36
        $region35: #{tpu_custom_call.1} parent=31 // pred_region
          %s1191 = smul.u32 4, %s22
          %1193 = vsyncadd %s1184, 0
          %s1194 = smul.addr %s21, 8
          %s1195 = sadd.s32 %s1191, %s1194
          %s1196 = smul.addr %s1195, 8
          %s1197 = scalar_lea.hbm %s3, %s1196
          %s1198 = sshll.u32 %s1187, 4
          %s1199 = int_to_ptr.vmem [resolvable:$true] %s1198
          %s1200 = sshll.u32 %s1197, 4
          %s1201 = int_to_ptr.hbm [resolvable:$true] %s1200
          %1206 = dma.vmem_to_hbm [thread:$0]  %s1199, 512, %s1201, %s1184, 128, 128, 8
        $region36: #{tpu_custom_call.1} parent=31 // pred_fallthru
          _
      $region32: #{tpu_custom_call.1} parent=5 // pred_fallthru
        _
      %p1207 = scmp.le.s32.totalorder 2, %s12
      // Predicated region
      $region37: #{tpu_custom_call.1} parent=5 // pred_check
        %p1208 = pneg %p1207
      $region38: #{tpu_custom_call.1} parent=5 // pred_check_branch
        %1210 = sbr.rel (%p1208) target = $region40
      $region39: #{tpu_custom_call.1} parent=5 // pred_region
        %s1211 = ssub.s32 %s12, 2
        // Predicated region
        $region41: #{tpu_custom_call.1} parent=39 // pred_check
          %p1212 = pneg %p123
        $region42: #{tpu_custom_call.1} parent=39 // pred_check_branch
          %1214 = sbr.rel (%p1212) target = $region44
        $region43: #{tpu_custom_call.1} parent=39 // pred_region
          %s1215 = sand.u32 %s108, 1
          %s1216 = scalar_lea.sflag [#allocation4], %s1215
          %s1217 = sand.u32 %s108, 1
          %s1218 = smul.addr %s1217, 32
          %s1219 = scalar_lea.vmem [#allocation3], %s1218
          %1221 = dma.done %s1216, 512
        $region44: #{tpu_custom_call.1} parent=39 // pred_fallthru
          _
      $region40: #{tpu_custom_call.1} parent=5 // pred_fallthru
        _
    $region6: #{tpu_custom_call.1} parent=1 // loop_footer
      %s16 = sadd.s32 1, %s12
    $region7: #{tpu_custom_call.1} parent=1 // loop_footer_branch
      %11 = sbr.rel target = $region3
    $region8: #{tpu_custom_call.1} parent=1 // loop_exit
      _
    %1222 = vsyncpa [#allocation4], 1
    %s1223 = scalar_lea.sflag [#allocation4], 1
    %1224 = vsyncpa %s1223, 1

</llo_original>
